<compile_context>
chip_gen: v7x
topology: tpu7x:2x2x1
jax: 0.10.0
libtpu: 0.0.40
codegen_flags: <defaults>
</compile_context>

<pallas_src>
import jax
import jax.numpy as jnp
from jax import lax
from jax.experimental import pallas as pl
from jax.experimental.pallas import tpu as pltpu


def _ffn_kernel(x_ref, w1t_ref, b1t_ref, w2t_ref, b2t_ref, g_ref, beta_ref, o_ref):
    # x_ref block: [bb, S, D] f32; weights pre-transposed + pre-cast to bf16.
    w1t = w1t_ref[...]          # [F, S]  bf16
    w2t = w2t_ref[...]          # [D, F]  bf16
    b1t = b1t_ref[...]          # [F, 1]  f32
    b2t = b2t_ref[...]          # [S, 1]  f32
    g = g_ref[...]              # [1, D]  f32
    beta = beta_ref[...]        # [1, D]  f32

    bb = x_ref.shape[0]
    for b in range(bb):          # static trip count -> unrolled at trace time
        x = x_ref[b]             # [S, D] f32 (kept f32 for residual / LayerNorm)

        # GEMM 1 (transposed form, no x.T needed):
        #   hT[f, d] = relu( sum_s w1[s, f] * x[s, d] + b1[f] )
        h = jnp.dot(w1t, x.astype(jnp.bfloat16),
                    preferred_element_type=jnp.float32) + b1t      # [F, D] f32
        h = jnp.maximum(h, 0.0)

        # GEMM 2 (== (h @ w2 + b2).T of the reference, computed w/o transpose):
        #   yT[s, d] = sum_f w2[f, s] * hT[f, d] + b2[s]
        y = jnp.dot(w2t, h.astype(jnp.bfloat16),
                    preferred_element_type=jnp.float32) + b2t      # [S, D] f32

        # dropout(p=0.0) is identity; layer_norm(x + yT) over model_dim, eps=1e-5.
        r = x + y
        mean = jnp.mean(r, axis=-1, keepdims=True)
        # Two-pass variance kept for numerical robustness; the axis=-1 XLU
        # reductions have slack now that the transposes are gone.
        var = jnp.mean((r - mean) * (r - mean), axis=-1, keepdims=True)
        norm = (r - mean) * lax.rsqrt(var + 1e-5)
        o_ref[b] = (norm * g + beta).astype(o_ref.dtype)


def positional_wise_feed_forward(x, w1, b1, w2, b2, gamma, beta):
    """x: [B, S, D]; w1: [D, F] (in,out); b1: [1, F]; w2: [F, D]; b2: [1, D];
    gamma/beta: [1, D].  Returns [B, S, D]."""
    B, S, D = x.shape
    F = w1.shape[1]
    assert S == D, "Reference module requires seq_len == model_dim (Linear over transposed axis)."

    # Pre-transpose + pre-cast the invariant parameters once (outside the kernel).
    w1t = jnp.asarray(w1.T, dtype=jnp.bfloat16)               # [F, S]
    w2t = jnp.asarray(w2.T, dtype=jnp.bfloat16)               # [D, F]
    b1t = jnp.asarray(b1.reshape(F, 1), dtype=jnp.float32)    # [F, 1]
    b2t = jnp.asarray(b2.reshape(S, 1), dtype=jnp.float32)    # [S, 1]
    gamma = jnp.asarray(gamma.reshape(1, D), dtype=jnp.float32)
    beta = jnp.asarray(beta.reshape(1, D), dtype=jnp.float32)

    # At most 2 grid blocks over batch (2 TCs on v7x; fewer per-step overheads
    # on single-TC v5e/v6e as B grows).
    num_blocks = 2 if (B >= 2 and B % 2 == 0) else 1
    bb = B // num_blocks

    grid_spec = pltpu.PrefetchScalarGridSpec(
        num_scalar_prefetch=0,
        grid=(num_blocks,),
        in_specs=[
            pl.BlockSpec((bb, S, D), lambda i: (i, 0, 0)),   # x (batch block)
            pl.BlockSpec((F, S), lambda i: (0, 0)),          # w1.T (bf16, invariant)
            pl.BlockSpec((F, 1), lambda i: (0, 0)),          # b1.T
            pl.BlockSpec((D, F), lambda i: (0, 0)),          # w2.T (bf16, invariant)
            pl.BlockSpec((S, 1), lambda i: (0, 0)),          # b2.T
            pl.BlockSpec((1, D), lambda i: (0, 0)),          # gamma
            pl.BlockSpec((1, D), lambda i: (0, 0)),          # beta
        ],
        out_specs=pl.BlockSpec((bb, S, D), lambda i: (i, 0, 0)),
    )
    # TODO(synk): at realistic sizes (e.g. D=1024, F=4096, long S) tile F as an
    # extra "arbitrary" grid axis with an f32 VMEM accumulator and set
    # pltpu.CompilerParams(vmem_limit_bytes=...) explicitly (v7x has 64 MiB VMEM).
    return pl.pallas_call(
        _ffn_kernel,
        out_shape=jax.ShapeDtypeStruct((B, S, D), x.dtype),
        grid_spec=grid_spec,
        compiler_params=pltpu.CompilerParams(
            dimension_semantics=("parallel",)),
    )(x, w1t, b1t, w2t, b2t, gamma, beta)


def _reference_f32(x, w1, b1, w2, b2, gamma, beta):
    xt = jnp.swapaxes(x, 1, 2)
    h = jnp.maximum(xt @ w1 + b1, 0.0)
    y = h @ w2 + b2
    y = jnp.swapaxes(y, 1, 2)
    r = x + y
    mean = jnp.mean(r, axis=-1, keepdims=True)
    var = jnp.mean((r - mean) ** 2, axis=-1, keepdims=True)
    return (r - mean) / jnp.sqrt(var + 1e-5) * gamma + beta


def _reference_mixed(x, w1, b1, w2, b2, gamma, beta):
    """Pure-JAX mirror of the kernel's mixed precision (bf16 GEMMs, f32 rest)."""
    w1t = w1.T.astype(jnp.bfloat16)
    w2t = w2.T.astype(jnp.bfloat16)
    b1t = b1.reshape(-1, 1)
    b2t = b2.reshape(-1, 1)
    outs = []
    for b in range(x.shape[0]):
        xb = x[b]
        h = jnp.maximum(
            jnp.dot(w1t, xb.astype(jnp.bfloat16),
                    preferred_element_type=jnp.float32) + b1t, 0.0)
        y = jnp.dot(w2t, h.astype(jnp.bfloat16),
                    preferred_element_type=jnp.float32) + b2t
        r = xb + y
        mean = jnp.mean(r, axis=-1, keepdims=True)
        var = jnp.mean((r - mean) ** 2, axis=-1, keepdims=True)
        outs.append((r - mean) / jnp.sqrt(var + 1e-5) * gamma + beta)
    return jnp.stack(outs, axis=0)


if __name__ == "__main__":
    model_dim = 128      # also seq_len (required by the module's semantics)
    ffn_dim = 256
    batch = 2
    seq = model_dim

    key = jax.random.PRNGKey(0)
    kx, k1, kb1, k2, kb2 = jax.random.split(key, 5)

    x = jax.random.normal(kx, (batch, seq, model_dim), dtype=jnp.float32)

    # Parameters stored as [in, out] (pre-transposed relative to nn.Linear.weight).
    w1 = jax.random.normal(k1, (model_dim, ffn_dim), dtype=jnp.float32) * 0.02
    b1 = jax.random.normal(kb1, (1, ffn_dim), dtype=jnp.float32) * 0.02
    w2 = jax.random.normal(k2, (ffn_dim, model_dim), dtype=jnp.float32) * 0.02
    b2 = jax.random.normal(kb2, (1, model_dim), dtype=jnp.float32) * 0.02
    gamma = jnp.ones((1, model_dim), dtype=jnp.float32)
    beta = jnp.zeros((1, model_dim), dtype=jnp.float32)

    # TODO(synk): dropout is identity here (module default p=0.0 / eval mode);
    # non-zero training dropout would need pltpu.prng_* inside the kernel.

    out = positional_wise_feed_forward(x, w1, b1, w2, b2, gamma, beta)
    out = jax.block_until_ready(out)
    assert out.shape == (batch, seq, model_dim)

    # Tight check against a pure-JAX mirror of the kernel's mixed precision.
    ref_mixed = _reference_mixed(x, w1, b1, w2, b2, gamma, beta)
    assert jnp.allclose(out, ref_mixed, atol=2e-3, rtol=2e-3)

    # Looser check against the full-f32 reference (difference = bf16 GEMM rounding).
    ref_f32 = _reference_f32(x, w1, b1, w2, b2, gamma, beta)
    assert jnp.allclose(out, ref_f32, atol=2e-2, rtol=2e-2)

    print("KERNEL_OK")
</pallas_src>

<mosaic_0001>
module attributes {stable_mosaic.version = 11 : i64} {
  func.func @_ffn_kernel(%arg0: i32, %arg1: memref<1x128x128xf32, #tpu.memory_space<vmem>>, %arg2: memref<256x128xbf16, #tpu.memory_space<vmem>>, %arg3: memref<256x1xf32, #tpu.memory_space<vmem>>, %arg4: memref<128x256xbf16, #tpu.memory_space<vmem>>, %arg5: memref<128x1xf32, #tpu.memory_space<vmem>>, %arg6: memref<1x128xf32, #tpu.memory_space<vmem>>, %arg7: memref<1x128xf32, #tpu.memory_space<vmem>>, %arg8: memref<1x128x128xf32, #tpu.memory_space<vmem>>) attributes {dimension_semantics = [#tpu.dimension_semantics<parallel>], iteration_bounds = array<i64: 2>, scalar_prefetch = 0 : i64, scratch_operands = 0 : i64, tpu.core_type = #tpu.core_type<tc>, window_params = [{transform_indices = @transform_0, window_bounds = array<i64: 1, 128, 128>}, {pipeline_mode = #tpu.pipeline_mode<synchronous>, transform_indices = @transform_1, window_bounds = array<i64: 256, 128>}, {pipeline_mode = #tpu.pipeline_mode<synchronous>, transform_indices = @transform_2, window_bounds = array<i64: 256, 1>}, {pipeline_mode = #tpu.pipeline_mode<synchronous>, transform_indices = @transform_3, window_bounds = array<i64: 128, 256>}, {pipeline_mode = #tpu.pipeline_mode<synchronous>, transform_indices = @transform_4, window_bounds = array<i64: 128, 1>}, {pipeline_mode = #tpu.pipeline_mode<synchronous>, transform_indices = @transform_5, window_bounds = array<i64: 1, 128>}, {pipeline_mode = #tpu.pipeline_mode<synchronous>, transform_indices = @transform_6, window_bounds = array<i64: 1, 128>}, {transform_indices = @transform_7, window_bounds = array<i64: 1, 128, 128>}]} {
    %c0 = arith.constant 0 : index
    %c0_0 = arith.constant 0 : index
    %0 = vector.load %arg2[%c0, %c0_0] : memref<256x128xbf16, #tpu.memory_space<vmem>>, vector<256x128xbf16>
    %c0_1 = arith.constant 0 : index
    %c0_2 = arith.constant 0 : index
    %1 = vector.load %arg4[%c0_1, %c0_2] : memref<128x256xbf16, #tpu.memory_space<vmem>>, vector<128x256xbf16>
    %c0_3 = arith.constant 0 : index
    %c0_4 = arith.constant 0 : index
    %2 = vector.load %arg3[%c0_3, %c0_4] : memref<256x1xf32, #tpu.memory_space<vmem>>, vector<256x1xf32>
    %c0_5 = arith.constant 0 : index
    %c0_6 = arith.constant 0 : index
    %3 = vector.load %arg5[%c0_5, %c0_6] : memref<128x1xf32, #tpu.memory_space<vmem>>, vector<128x1xf32>
    %c0_7 = arith.constant 0 : index
    %c0_8 = arith.constant 0 : index
    %4 = vector.load %arg6[%c0_7, %c0_8] : memref<1x128xf32, #tpu.memory_space<vmem>>, vector<1x128xf32>
    %c0_9 = arith.constant 0 : index
    %c0_10 = arith.constant 0 : index
    %5 = vector.load %arg7[%c0_9, %c0_10] : memref<1x128xf32, #tpu.memory_space<vmem>>, vector<1x128xf32>
    %c0_11 = arith.constant 0 : index
    %c0_12 = arith.constant 0 : index
    %c0_13 = arith.constant 0 : index
    %6 = vector.load %arg1[%c0_11, %c0_12, %c0_13] : memref<1x128x128xf32, #tpu.memory_space<vmem>>, vector<1x128x128xf32>
    %7 = vector.shape_cast %6 : vector<1x128x128xf32> to vector<128x128xf32>
    %8 = arith.truncf %7 : vector<128x128xf32> to vector<128x128xbf16>
    %cst = arith.constant dense<0.000000e+00> : vector<256x128xf32>
    %9 = tpu.matmul %0, %8, %cst {dimension_numbers = #tpu.dot_dimension_numbers<[1], [0], [0], [1], [0, 0, 1, 1], [], []>} : vector<256x128xbf16>, vector<128x128xbf16>, vector<256x128xf32> -> vector<256x128xf32>
    %10 = vector.broadcast %2 : vector<256x1xf32> to vector<256x128xf32>
    %11 = arith.addf %9, %10 : vector<256x128xf32>
    %cst_14 = arith.constant 0.000000e+00 : f32
    %12 = vector.broadcast %cst_14 : f32 to vector<256x128xf32>
    %13 = arith.maximumf %11, %12 : vector<256x128xf32>
    %14 = arith.truncf %13 : vector<256x128xf32> to vector<256x128xbf16>
    %cst_15 = arith.constant dense<0.000000e+00> : vector<128x128xf32>
    %15 = tpu.matmul %1, %14, %cst_15 {dimension_numbers = #tpu.dot_dimension_numbers<[1], [0], [0], [1], [0, 0, 1, 1], [], []>} : vector<128x256xbf16>, vector<256x128xbf16>, vector<128x128xf32> -> vector<128x128xf32>
    %16 = vector.broadcast %3 : vector<128x1xf32> to vector<128x128xf32>
    %17 = arith.addf %15, %16 : vector<128x128xf32>
    %18 = arith.addf %7, %17 : vector<128x128xf32>
    %cst_16 = arith.constant dense<0.000000e+00> : vector<128xf32>
    %19 = vector.multi_reduction <add>, %18, %cst_16 [1] : vector<128x128xf32> to vector<128xf32>
    %20 = vector.shape_cast %19 : vector<128xf32> to vector<128x1xf32>
    %cst_17 = arith.constant 1.280000e+02 : f32
    %21 = vector.broadcast %cst_17 : f32 to vector<128x1xf32>
    %22 = arith.divf %20, %21 : vector<128x1xf32>
    %23 = vector.broadcast %22 : vector<128x1xf32> to vector<128x128xf32>
    %24 = arith.subf %18, %23 : vector<128x128xf32>
    %25 = vector.broadcast %22 : vector<128x1xf32> to vector<128x128xf32>
    %26 = arith.subf %18, %25 : vector<128x128xf32>
    %27 = arith.mulf %24, %26 : vector<128x128xf32>
    %cst_18 = arith.constant dense<0.000000e+00> : vector<128xf32>
    %28 = vector.multi_reduction <add>, %27, %cst_18 [1] : vector<128x128xf32> to vector<128xf32>
    %29 = vector.shape_cast %28 : vector<128xf32> to vector<128x1xf32>
    %cst_19 = arith.constant 1.280000e+02 : f32
    %30 = vector.broadcast %cst_19 : f32 to vector<128x1xf32>
    %31 = arith.divf %29, %30 : vector<128x1xf32>
    %32 = vector.broadcast %22 : vector<128x1xf32> to vector<128x128xf32>
    %33 = arith.subf %18, %32 : vector<128x128xf32>
    %cst_20 = arith.constant 9.99999974E-6 : f32
    %34 = vector.broadcast %cst_20 : f32 to vector<128x1xf32>
    %35 = arith.addf %31, %34 : vector<128x1xf32>
    %36 = math.rsqrt %35 : vector<128x1xf32>
    %37 = vector.broadcast %36 : vector<128x1xf32> to vector<128x128xf32>
    %38 = arith.mulf %33, %37 : vector<128x128xf32>
    %39 = vector.broadcast %4 : vector<1x128xf32> to vector<128x128xf32>
    %40 = arith.mulf %38, %39 : vector<128x128xf32>
    %41 = vector.broadcast %5 : vector<1x128xf32> to vector<128x128xf32>
    %42 = arith.addf %40, %41 : vector<128x128xf32>
    %c0_21 = arith.constant 0 : index
    %c0_22 = arith.constant 0 : index
    %c0_23 = arith.constant 0 : index
    %43 = vector.load %arg8[%c0_21, %c0_22, %c0_23] : memref<1x128x128xf32, #tpu.memory_space<vmem>>, vector<1x128x128xf32>
    %44 = vector.shape_cast %43 : vector<1x128x128xf32> to vector<128x128xf32>
    %45 = vector.shape_cast %42 : vector<128x128xf32> to vector<1x128x128xf32>
    tpu.vector_store %arg8[%c0_21, %c0_22, %c0_23], %45 {strides = array<i32>} : memref<1x128x128xf32, #tpu.memory_space<vmem>>, vector<1x128x128xf32>,
    return
  }
  func.func @transform_0(%arg0: i32) -> (i32, i32, i32) {
    %c0_i32 = arith.constant 0 : i32
    %c0_i32_0 = arith.constant 0 : i32
    %c0_i32_1 = arith.constant 0 : i32
    return %arg0, %c0_i32, %c0_i32_0 : i32, i32, i32
  }
  func.func @transform_1(%arg0: i32) -> (i32, i32) {
    %c0_i32 = arith.constant 0 : i32
    %c0_i32_0 = arith.constant 0 : i32
    %c0_i32_1 = arith.constant 0 : i32
    return %c0_i32, %c0_i32_0 : i32, i32
  }
  func.func @transform_2(%arg0: i32) -> (i32, i32) {
    %c0_i32 = arith.constant 0 : i32
    %c0_i32_0 = arith.constant 0 : i32
    %c0_i32_1 = arith.constant 0 : i32
    return %c0_i32, %c0_i32_0 : i32, i32
  }
  func.func @transform_3(%arg0: i32) -> (i32, i32) {
    %c0_i32 = arith.constant 0 : i32
    %c0_i32_0 = arith.constant 0 : i32
    %c0_i32_1 = arith.constant 0 : i32
    return %c0_i32, %c0_i32_0 : i32, i32
  }
  func.func @transform_4(%arg0: i32) -> (i32, i32) {
    %c0_i32 = arith.constant 0 : i32
    %c0_i32_0 = arith.constant 0 : i32
    %c0_i32_1 = arith.constant 0 : i32
    return %c0_i32, %c0_i32_0 : i32, i32
  }
  func.func @transform_5(%arg0: i32) -> (i32, i32) {
    %c0_i32 = arith.constant 0 : i32
    %c0_i32_0 = arith.constant 0 : i32
    %c0_i32_1 = arith.constant 0 : i32
    return %c0_i32, %c0_i32_0 : i32, i32
  }
  func.func @transform_6(%arg0: i32) -> (i32, i32) {
    %c0_i32 = arith.constant 0 : i32
    %c0_i32_0 = arith.constant 0 : i32
    %c0_i32_1 = arith.constant 0 : i32
    return %c0_i32, %c0_i32_0 : i32, i32
  }
  func.func @transform_7(%arg0: i32) -> (i32, i32, i32) {
    %c0_i32 = arith.constant 0 : i32
    %c0_i32_0 = arith.constant 0 : i32
    %c0_i32_1 = arith.constant 0 : i32
    return %arg0, %c0_i32, %c0_i32_0 : i32, i32, i32
  }
}

</mosaic_0001>

<llo_original>
// kernel: tpu_custom_call.1
$region0: #{tpu_custom_call.1}
  #allocation0 [shape = 'u32[]', space=smem, size = 0x4, offset = 0x4, fixed_abs, tag = 'smem constant byte address 0x4 - core index']
  #allocation1 [shape = 'u32[144,128]{1,0:T(1,128)}', space=vmem, size = 0x12000, scoped, tag = 'internal scratch']
  %s0 = inlined_call_operand.vmem [shape: f32[2,128,128], index: 0, kind: input, shape index: {}]
  %s1 = inlined_call_operand.vmem [shape: bf16[256,128], index: 1, kind: input, shape index: {}]
  %s2 = inlined_call_operand.vmem [shape: f32[256,1], index: 2, kind: input, shape index: {}]
  %s3 = inlined_call_operand.hbm [shape: bf16[128,256], index: 3, kind: input, shape index: {}]
  %s4 = inlined_call_operand.vmem [shape: f32[128,1], index: 4, kind: input, shape index: {}]
  %s5 = inlined_call_operand.vmem [shape: f32[1,128], index: 5, kind: input, shape index: {}]
  %s6 = inlined_call_operand.vmem [shape: f32[1,128], index: 6, kind: input, shape index: {}]
  %s7 = inlined_call_operand.hbm [shape: f32[2,128,128], index: 7, kind: output, shape index: {}]
  %s8 = sld [smem:[#allocation0]]
  $region65: #{tpu_custom_call.1} parent=0
    _
  %s10 = ssub.s32 1, %s8
  %s11 = scalar_select 0, %s10, %s8
  $region1: #{tpu_custom_call.1} parent=0
    #allocation2 [shape = 'u8[65536]{0}', space=vmem, size = 0x10000, scoped, tag = 'input window, operand 3, single buffered']
    #allocation3 [shape = 's32[2]{0}', space=sflag, size = 0x8, scoped, tag = 'scoped memory for tpu_custom_call.1']
    #allocation4 [shape = 's32[2]{0}', space=sflag, size = 0x8, scoped, tag = 'scoped memory for tpu_custom_call.1']
    #allocation5 [shape = 'u8[131072]{0}', space=vmem, size = 0x20000, scoped, tag = 'output window, operand 0']
    %12 = vsyncpa [#allocation3], 0
    %13 = vsyncpa [#allocation4], 0
    %s14 = scalar_lea.sflag [#allocation4], 1
    %15 = vsyncpa %s14, 0
    loop: start=0, step=1, limit=4
    $region2: #{tpu_custom_call.1} parent=1 // loop_pre_header
      _
    $region3: #{tpu_custom_call.1} parent=1 // loop_header
      %s17 = sphi 0, %s21
      %p18 = scmp.ge.s32.totalorder %s17, 4
      %s27 = sphi 0, %s29
      %s30 = sphi 0, %s27
      %s31 = sphi 0, %s30
      %s47 = sphi 0, %s31
      %s51 = sphi 0, %s51
      %s53 = sphi 0, %s51
      %s54 = sphi 0, %s53
      %s68 = sphi 0, %s54
      %s72 = sphi 0, %s72
      %s74 = sphi 0, %s72
      %s75 = sphi 0, %s74
      %s89 = sphi 0, %s75
      %s93 = sphi 0, %s93
      %s95 = sphi 0, %s93
      %s96 = sphi 0, %s95
      %s110 = sphi 0, %s96
      %s114 = sphi 0, %s114
      %s116 = sphi 0, %s114
      %s117 = sphi 0, %s116
      %s131 = sphi 0, %s117
      %s135 = sphi 0, %s135
      %s137 = sphi 0, %s135
      %s138 = sphi 0, %s137
      %s152 = sphi 0, %s138
      %s156 = sphi 0, %s156
      %s158 = sphi 0, %s156
      %s159 = sphi 0, %s158
      %s173 = sphi 0, %s159
      %s179 = sphi 0, %s181
      %s182 = sphi 0, %s179
      %s183 = sphi 0, %s182
      %s199 = sphi 0, %s183
    $region4: #{tpu_custom_call.1} parent=1 // loop_header_branch
      %20 = sbr.rel (%p18) target = $region8
    $region5: #{tpu_custom_call.1} parent=1 // loop_body
      %s22 = ssub.s32 %s17, 1
      %s23 = ssub.s32 %s17, 2
      %s24 = sadd.s32 %s17, 1
      %s25 = ssub.s32 %s17, %s24
      %p26 = scmp.eq.s32.totalorder %s25, 0
      %s28 = sadd.s32 %s27, 1
      %s29 = scalar_select %p26, %s27, %s28
      %p32 = pneg %p26
      %p33 = scmp.eq.s32.totalorder %s17, 1
      %p34 = por %p32, %p33
      %p35 = scmp.ne.s32.totalorder %s27, %s30
      %p36 = scmp.eq.s32.totalorder %s17, 0
      %p37 = por %p35, %p36
      %p38 = scmp.ne.s32.totalorder %s27, %s30
      %p39 = scmp.eq.s32.totalorder %s22, 1
      %p40 = por %p38, %p39
      %p41 = scmp.ne.s32.totalorder %s30, %s31
      %p42 = scmp.eq.s32.totalorder %s22, 0
      %p43 = por %p41, %p42
      %p44 = scmp.ne.s32.totalorder %s30, %s31
      %p45 = scmp.eq.s32.totalorder %s23, 1
      %p46 = por %p44, %p45
      %p48 = scmp.ne.s32.totalorder %s31, %s47
      %p49 = scmp.eq.s32.totalorder %s23, 0
      %p50 = por %p48, %p49
      %s52 = sadd.s32 %s51, 1
      %p55 = scmp.eq.s32.totalorder %s17, 1
      %p56 = scmp.ne.s32.totalorder %s51, %s53
      %p57 = scmp.eq.s32.totalorder %s17, 0
      %p58 = por %p56, %p57
      %p59 = scmp.ne.s32.totalorder %s51, %s53
      %p60 = scmp.eq.s32.totalorder %s22, 1
      %p61 = por %p59, %p60
      %p62 = scmp.ne.s32.totalorder %s53, %s54
      %p63 = scmp.eq.s32.totalorder %s22, 0
      %p64 = por %p62, %p63
      %p65 = scmp.ne.s32.totalorder %s53, %s54
      %p66 = scmp.eq.s32.totalorder %s23, 1
      %p67 = por %p65, %p66
      %p69 = scmp.ne.s32.totalorder %s54, %s68
      %p70 = scmp.eq.s32.totalorder %s23, 0
      %p71 = por %p69, %p70
      %s73 = sadd.s32 %s72, 1
      %p76 = scmp.eq.s32.totalorder %s17, 1
      %p77 = scmp.ne.s32.totalorder %s72, %s74
      %p78 = scmp.eq.s32.totalorder %s17, 0
      %p79 = por %p77, %p78
      %p80 = scmp.ne.s32.totalorder %s72, %s74
      %p81 = scmp.eq.s32.totalorder %s22, 1
      %p82 = por %p80, %p81
      %p83 = scmp.ne.s32.totalorder %s74, %s75
      %p84 = scmp.eq.s32.totalorder %s22, 0
      %p85 = por %p83, %p84
      %p86 = scmp.ne.s32.totalorder %s74, %s75
      %p87 = scmp.eq.s32.totalorder %s23, 1
      %p88 = por %p86, %p87
      %p90 = scmp.ne.s32.totalorder %s75, %s89
      %p91 = scmp.eq.s32.totalorder %s23, 0
      %p92 = por %p90, %p91
      %s94 = sadd.s32 %s93, 1
      %p97 = scmp.eq.s32.totalorder %s17, 1
      %p98 = scmp.ne.s32.totalorder %s93, %s95
      %p99 = scmp.eq.s32.totalorder %s17, 0
      %p100 = por %p98, %p99
      %p101 = scmp.ne.s32.totalorder %s93, %s95
      %p102 = scmp.eq.s32.totalorder %s22, 1
      %p103 = por %p101, %p102
      %p104 = scmp.ne.s32.totalorder %s95, %s96
      %p105 = scmp.eq.s32.totalorder %s22, 0
      %p106 = por %p104, %p105
      %p107 = scmp.ne.s32.totalorder %s95, %s96
      %p108 = scmp.eq.s32.totalorder %s23, 1
      %p109 = por %p107, %p108
      %p111 = scmp.ne.s32.totalorder %s96, %s110
      %p112 = scmp.eq.s32.totalorder %s23, 0
      %p113 = por %p111, %p112
      %s115 = sadd.s32 %s114, 1
      %p118 = scmp.eq.s32.totalorder %s17, 1
      %p119 = scmp.ne.s32.totalorder %s114, %s116
      %p120 = scmp.eq.s32.totalorder %s17, 0
      %p121 = por %p119, %p120
      %p122 = scmp.ne.s32.totalorder %s114, %s116
      %p123 = scmp.eq.s32.totalorder %s22, 1
      %p124 = por %p122, %p123
      %p125 = scmp.ne.s32.totalorder %s116, %s117
      %p126 = scmp.eq.s32.totalorder %s22, 0
      %p127 = por %p125, %p126
      %p128 = scmp.ne.s32.totalorder %s116, %s117
      %p129 = scmp.eq.s32.totalorder %s23, 1
      %p130 = por %p128, %p129
      %p132 = scmp.ne.s32.totalorder %s117, %s131
      %p133 = scmp.eq.s32.totalorder %s23, 0
      %p134 = por %p132, %p133
      %s136 = sadd.s32 %s135, 1
      %p139 = scmp.eq.s32.totalorder %s17, 1
      %p140 = scmp.ne.s32.totalorder %s135, %s137
      %p141 = scmp.eq.s32.totalorder %s17, 0
      %p142 = por %p140, %p141
      %p143 = scmp.ne.s32.totalorder %s135, %s137
      %p144 = scmp.eq.s32.totalorder %s22, 1
      %p145 = por %p143, %p144
      %p146 = scmp.ne.s32.totalorder %s137, %s138
      %p147 = scmp.eq.s32.totalorder %s22, 0
      %p148 = por %p146, %p147
      %p149 = scmp.ne.s32.totalorder %s137, %s138
      %p150 = scmp.eq.s32.totalorder %s23, 1
      %p151 = por %p149, %p150
      %p153 = scmp.ne.s32.totalorder %s138, %s152
      %p154 = scmp.eq.s32.totalorder %s23, 0
      %p155 = por %p153, %p154
      %s157 = sadd.s32 %s156, 1
      %p160 = scmp.eq.s32.totalorder %s17, 1
      %p161 = scmp.ne.s32.totalorder %s156, %s158
      %p162 = scmp.eq.s32.totalorder %s17, 0
      %p163 = por %p161, %p162
      %p164 = scmp.ne.s32.totalorder %s156, %s158
      %p165 = scmp.eq.s32.totalorder %s22, 1
      %p166 = por %p164, %p165
      %p167 = scmp.ne.s32.totalorder %s158, %s159
      %p168 = scmp.eq.s32.totalorder %s22, 0
      %p169 = por %p167, %p168
      %p170 = scmp.ne.s32.totalorder %s158, %s159
      %p171 = scmp.eq.s32.totalorder %s23, 1
      %p172 = por %p170, %p171
      %p174 = scmp.ne.s32.totalorder %s159, %s173
      %p175 = scmp.eq.s32.totalorder %s23, 0
      %p176 = por %p174, %p175
      %s177 = ssub.s32 %s17, %s24
      %p178 = scmp.eq.s32.totalorder %s177, 0
      %s180 = sadd.s32 %s179, 1
      %s181 = scalar_select %p178, %s179, %s180
      %p184 = pneg %p178
      %p185 = scmp.eq.s32.totalorder %s17, 1
      %p186 = por %p184, %p185
      %p187 = scmp.ne.s32.totalorder %s179, %s182
      %p188 = scmp.eq.s32.totalorder %s17, 0
      %p189 = por %p187, %p188
      %p190 = scmp.ne.s32.totalorder %s179, %s182
      %p191 = scmp.eq.s32.totalorder %s22, 1
      %p192 = por %p190, %p191
      %p193 = scmp.ne.s32.totalorder %s182, %s183
      %p194 = scmp.eq.s32.totalorder %s22, 0
      %p195 = por %p193, %p194
      %p196 = scmp.ne.s32.totalorder %s182, %s183
      %p197 = scmp.eq.s32.totalorder %s23, 1
      %p198 = por %p196, %p197
      %p200 = scmp.ne.s32.totalorder %s183, %s199
      %p201 = scmp.eq.s32.totalorder %s23, 0
      %p202 = por %p200, %p201
      %p203 = scmp.le.s32.totalorder 1, %s17
      %p204 = scmp.lt.s32.totalorder %s17, 3
      %p205 = pnand %p203, %p204
      %p206 = pneg %p205
      // Predicated region
      $region9: #{tpu_custom_call.1} parent=5 // pred_check
        _
      $region10: #{tpu_custom_call.1} parent=5 // pred_check_branch
        %208 = sbr.rel (%p205) target = $region12
      $region11: #{tpu_custom_call.1} parent=5 // pred_region
        %s209 = ssub.s32 %s17, 1
        // Predicated region
        $region13: #{tpu_custom_call.1} parent=11 // pred_check
          %p210 = pneg %p64
        $region14: #{tpu_custom_call.1} parent=11 // pred_check_branch
          %212 = sbr.rel (%p210) target = $region16
        $region15: #{tpu_custom_call.1} parent=11 // pred_region
          _
        $region16: #{tpu_custom_call.1} parent=11 // pred_fallthru
          _
        // Predicated region
        $region17: #{tpu_custom_call.1} parent=11 // pred_check
          %p213 = pneg %p85
        $region18: #{tpu_custom_call.1} parent=11 // pred_check_branch
          %215 = sbr.rel (%p213) target = $region20
        $region19: #{tpu_custom_call.1} parent=11 // pred_region
          _
        $region20: #{tpu_custom_call.1} parent=11 // pred_fallthru
          _
        // Predicated region
        $region21: #{tpu_custom_call.1} parent=11 // pred_check
          %p216 = pneg %p106
        $region22: #{tpu_custom_call.1} parent=11 // pred_check_branch
          %218 = sbr.rel (%p216) target = $region24
        $region23: #{tpu_custom_call.1} parent=11 // pred_region
          %s220 = ssub.s32 2048, 2048
          %221 = vsyncadd [#allocation3], %s220
          %s222 = sshll.u32 [#allocation2], 4
          %s223 = int_to_ptr.vmem [resolvable:$true] %s222
          %228 = dma.hbm_to_vmem [thread:$0]  %s3, 2048, %s223, [#allocation3], 128, 128, 8
        $region24: #{tpu_custom_call.1} parent=11 // pred_fallthru
          _
        // Predicated region
        $region25: #{tpu_custom_call.1} parent=11 // pred_check
          %p229 = pneg %p127
        $region26: #{tpu_custom_call.1} parent=11 // pred_check_branch
          %231 = sbr.rel (%p229) target = $region28
        $region27: #{tpu_custom_call.1} parent=11 // pred_region
          _
        $region28: #{tpu_custom_call.1} parent=11 // pred_fallthru
          _
        // Predicated region
        $region29: #{tpu_custom_call.1} parent=11 // pred_check
          %p232 = pneg %p148
        $region30: #{tpu_custom_call.1} parent=11 // pred_check_branch
          %234 = sbr.rel (%p232) target = $region32
        $region31: #{tpu_custom_call.1} parent=11 // pred_region
          _
        $region32: #{tpu_custom_call.1} parent=11 // pred_fallthru
          _
        // Predicated region
        $region33: #{tpu_custom_call.1} parent=11 // pred_check
          %p235 = pneg %p169
        $region34: #{tpu_custom_call.1} parent=11 // pred_check_branch
          %237 = sbr.rel (%p235) target = $region36
        $region35: #{tpu_custom_call.1} parent=11 // pred_region
          _
        $region36: #{tpu_custom_call.1} parent=11 // pred_fallthru
          _
      $region12: #{tpu_custom_call.1} parent=5 // pred_fallthru
        _
      %p238 = scmp.lt.s32.totalorder %s17, 2
      // Predicated region
      $region37: #{tpu_custom_call.1} parent=5 // pred_check
        %p239 = pneg %p238
      $region38: #{tpu_custom_call.1} parent=5 // pred_check_branch
        %241 = sbr.rel (%p239) target = $region40
      $region39: #{tpu_custom_call.1} parent=5 // pred_region
        // Predicated region
        $region41: #{tpu_custom_call.1} parent=39 // pred_check
          %p242 = pneg %p37
        $region42: #{tpu_custom_call.1} parent=39 // pred_check_branch
          %244 = sbr.rel (%p242) target = $region44
        $region43: #{tpu_custom_call.1} parent=39 // pred_region
          %p245 = scmp.lt.s32.totalorder %s17, 1
          %s246 = scalar_select %p245, %s17, 1
          %s247 = smul.addr %s246, 16
          %s248 = smul.addr %s247, 8
          %s249 = scalar_lea.vmem %s0, %s248
        $region44: #{tpu_custom_call.1} parent=39 // pred_fallthru
          _
      $region40: #{tpu_custom_call.1} parent=5 // pred_fallthru
        _
      %p250 = scmp.le.s32.totalorder 1, %s17
      %p251 = scmp.lt.s32.totalorder %s17, 3
      %p252 = pnand %p250, %p251
      %p253 = pneg %p252
      // Predicated region
      $region45: #{tpu_custom_call.1} parent=5 // pred_check
        _
      $region46: #{tpu_custom_call.1} parent=5 // pred_check_branch
        %255 = sbr.rel (%p252) target = $region48
      $region47: #{tpu_custom_call.1} parent=5 // pred_region
        %s256 = ssub.s32 %s17, 1
        // Predicated region
        $region49: #{tpu_custom_call.1} parent=47 // pred_check
          %p257 = pneg %p106
        $region50: #{tpu_custom_call.1} parent=47 // pred_check_branch
          %259 = sbr.rel (%p257) target = $region52
        $region51: #{tpu_custom_call.1} parent=47 // pred_region
          %260 = dma.done [#allocation3], 2048
        $region52: #{tpu_custom_call.1} parent=47 // pred_fallthru
          _
        %p261 = scmp.lt.s32.totalorder %s22, 1
        %s262 = scalar_select %p261, %s22, 1
        %s263 = smul.addr %s262, 16
        %s264 = smul.addr %s263, 8
        %s265 = scalar_lea.vmem %s0, %s264
        %p266 = pneg %p43
        %p267 = pneg %p40
        %p268 = pneg %p64
        %p269 = pneg %p61
        %p270 = pneg %p85
        %p271 = pneg %p82
        %p272 = pneg %p106
        %p273 = pneg %p103
        %p274 = pneg %p127
        %p275 = pneg %p124
        %p276 = pneg %p148
        %p277 = pneg %p145
        %p278 = pneg %p169
        %p279 = pneg %p166
        %p280 = pneg %p195
        %p281 = pneg %p192
        %s282 = sand.u32 %s182, 1
        %s283 = scalar_lea.sflag [#allocation4], %s282
        %s284 = sand.u32 %s182, 1
        %s285 = smul.addr %s284, 128
        %s286 = scalar_lea.vmem [#allocation5], %s285
        %p287 = scmp.lt.s32.totalorder %s22, 1
        %s288 = scalar_select %p287, %s22, 1
        %s289 = smul.addr %s288, 16
        %s290 = smul.addr %s289, 8
        %s291 = scalar_lea.vmem %s0, %s290
        %v293 = vld [vmem:[%s1] sm:$0xf]
        %v294 = vld [vmem:[%s1 + $0x4] sm:$0xf]
        %v295 = vld [vmem:[%s1 + $0x8] sm:$0xf]
        %v296 = vld [vmem:[%s1 + $0xc] sm:$0xf]
        %v297 = vld [vmem:[%s1 + $0x10] sm:$0xf]
        %v298 = vld [vmem:[%s1 + $0x14] sm:$0xf]
        %v299 = vld [vmem:[%s1 + $0x18] sm:$0xf]
        %v300 = vld [vmem:[%s1 + $0x1c] sm:$0xf]
        %v301 = vld [vmem:[%s1 + $0x20] sm:$0xf]
        %v302 = vld [vmem:[%s1 + $0x24] sm:$0xf]
        %v303 = vld [vmem:[%s1 + $0x28] sm:$0xf]
        %v304 = vld [vmem:[%s1 + $0x2c] sm:$0xf]
        %v305 = vld [vmem:[%s1 + $0x30] sm:$0xf]
        %v306 = vld [vmem:[%s1 + $0x34] sm:$0xf]
        %v307 = vld [vmem:[%s1 + $0x38] sm:$0xf]
        %v308 = vld [vmem:[%s1 + $0x3c] sm:$0xf]
        %v309 = vld [vmem:[%s1 + $0x40] sm:$0xf]
        %v310 = vld [vmem:[%s1 + $0x44] sm:$0xf]
        %v311 = vld [vmem:[%s1 + $0x48] sm:$0xf]
        %v312 = vld [vmem:[%s1 + $0x4c] sm:$0xf]
        %v313 = vld [vmem:[%s1 + $0x50] sm:$0xf]
        %v314 = vld [vmem:[%s1 + $0x54] sm:$0xf]
        %v315 = vld [vmem:[%s1 + $0x58] sm:$0xf]
        %v316 = vld [vmem:[%s1 + $0x5c] sm:$0xf]
        %v317 = vld [vmem:[%s1 + $0x60] sm:$0xf]
        %v318 = vld [vmem:[%s1 + $0x64] sm:$0xf]
        %v319 = vld [vmem:[%s1 + $0x68] sm:$0xf]
        %v320 = vld [vmem:[%s1 + $0x6c] sm:$0xf]
        %v321 = vld [vmem:[%s1 + $0x70] sm:$0xf]
        %v322 = vld [vmem:[%s1 + $0x74] sm:$0xf]
        %v323 = vld [vmem:[%s1 + $0x78] sm:$0xf]
        %v324 = vld [vmem:[%s1 + $0x7c] sm:$0xf]
        %v325 = vld [vmem:[#allocation2] sm:$0xff]
        %v326 = vld [vmem:[#allocation2 + $0x8] sm:$0xff]
        %v327 = vld [vmem:[#allocation2 + $0x10] sm:$0xff]
        %v328 = vld [vmem:[#allocation2 + $0x18] sm:$0xff]
        %v329 = vld [vmem:[#allocation2 + $0x20] sm:$0xff]
        %v330 = vld [vmem:[#allocation2 + $0x28] sm:$0xff]
        %v331 = vld [vmem:[#allocation2 + $0x30] sm:$0xff]
        %v332 = vld [vmem:[#allocation2 + $0x38] sm:$0xff]
        %v333 = vld [vmem:[#allocation2 + $0x40] sm:$0xff]
        %v334 = vld [vmem:[#allocation2 + $0x48] sm:$0xff]
        %v335 = vld [vmem:[#allocation2 + $0x50] sm:$0xff]
        %v336 = vld [vmem:[#allocation2 + $0x58] sm:$0xff]
        %v337 = vld [vmem:[#allocation2 + $0x60] sm:$0xff]
        %v338 = vld [vmem:[#allocation2 + $0x68] sm:$0xff]
        %v339 = vld [vmem:[#allocation2 + $0x70] sm:$0xff]
        %v340 = vld [vmem:[#allocation2 + $0x78] sm:$0xff]
        %v341 = vld [vmem:[%s2] sm:$0xff]
        %v342 = vld [vmem:[%s2 + $0x8] sm:$0xff]
        %v343 = vld [vmem:[%s2 + $0x10] sm:$0xff]
        %v344 = vld [vmem:[%s2 + $0x18] sm:$0xff]
        %v345 = vld [vmem:[%s2 + $0x20] sm:$0xff]
        %v346 = vld [vmem:[%s2 + $0x28] sm:$0xff]
        %v347 = vld [vmem:[%s2 + $0x30] sm:$0xff]
        %v348 = vld [vmem:[%s2 + $0x38] sm:$0xff]
        %v349 = vld [vmem:[%s2 + $0x40] sm:$0xff]
        %v350 = vld [vmem:[%s2 + $0x48] sm:$0xff]
        %v351 = vld [vmem:[%s2 + $0x50] sm:$0xff]
        %v352 = vld [vmem:[%s2 + $0x58] sm:$0xff]
        %v353 = vld [vmem:[%s2 + $0x60] sm:$0xff]
        %v354 = vld [vmem:[%s2 + $0x68] sm:$0xff]
        %v355 = vld [vmem:[%s2 + $0x70] sm:$0xff]
        %v356 = vld [vmem:[%s2 + $0x78] sm:$0xff]
        %v357 = vld [vmem:[%s2 + $0x80] sm:$0xff]
        %v358 = vld [vmem:[%s2 + $0x88] sm:$0xff]
        %v359 = vld [vmem:[%s2 + $0x90] sm:$0xff]
        %v360 = vld [vmem:[%s2 + $0x98] sm:$0xff]
        %v361 = vld [vmem:[%s2 + $0xa0] sm:$0xff]
        %v362 = vld [vmem:[%s2 + $0xa8] sm:$0xff]
        %v363 = vld [vmem:[%s2 + $0xb0] sm:$0xff]
        %v364 = vld [vmem:[%s2 + $0xb8] sm:$0xff]
        %v365 = vld [vmem:[%s2 + $0xc0] sm:$0xff]
        %v366 = vld [vmem:[%s2 + $0xc8] sm:$0xff]
        %v367 = vld [vmem:[%s2 + $0xd0] sm:$0xff]
        %v368 = vld [vmem:[%s2 + $0xd8] sm:$0xff]
        %v369 = vld [vmem:[%s2 + $0xe0] sm:$0xff]
        %v370 = vld [vmem:[%s2 + $0xe8] sm:$0xff]
        %v371 = vld [vmem:[%s2 + $0xf0] sm:$0xff]
        %v372 = vld [vmem:[%s2 + $0xf8] sm:$0xff]
        %v373 = vld [vmem:[%s4] sm:$0xff]
        %v374 = vld [vmem:[%s4 + $0x8] sm:$0xff]
        %v375 = vld [vmem:[%s4 + $0x10] sm:$0xff]
        %v376 = vld [vmem:[%s4 + $0x18] sm:$0xff]
        %v377 = vld [vmem:[%s4 + $0x20] sm:$0xff]
        %v378 = vld [vmem:[%s4 + $0x28] sm:$0xff]
        %v379 = vld [vmem:[%s4 + $0x30] sm:$0xff]
        %v380 = vld [vmem:[%s4 + $0x38] sm:$0xff]
        %v381 = vld [vmem:[%s4 + $0x40] sm:$0xff]
        %v382 = vld [vmem:[%s4 + $0x48] sm:$0xff]
        %v383 = vld [vmem:[%s4 + $0x50] sm:$0xff]
        %v384 = vld [vmem:[%s4 + $0x58] sm:$0xff]
        %v385 = vld [vmem:[%s4 + $0x60] sm:$0xff]
        %v386 = vld [vmem:[%s4 + $0x68] sm:$0xff]
        %v387 = vld [vmem:[%s4 + $0x70] sm:$0xff]
        %v388 = vld [vmem:[%s4 + $0x78] sm:$0xff]
        %v389 = vld [vmem:[%s5] sm:$0x1]
        %v390 = vld [vmem:[%s6] sm:$0x1]
        %v391 = vld [vmem:[%s291] sm:$0xff]
        %v392 = vld [vmem:[%s291 + $0x8] sm:$0xff]
        %v393 = vld [vmem:[%s291 + $0x10] sm:$0xff]
        %v394 = vld [vmem:[%s291 + $0x18] sm:$0xff]
        %v395 = vld [vmem:[%s291 + $0x20] sm:$0xff]
        %v396 = vld [vmem:[%s291 + $0x28] sm:$0xff]
        %v397 = vld [vmem:[%s291 + $0x30] sm:$0xff]
        %v398 = vld [vmem:[%s291 + $0x38] sm:$0xff]
        %v399 = vld [vmem:[%s291 + $0x40] sm:$0xff]
        %v400 = vld [vmem:[%s291 + $0x48] sm:$0xff]
        %v401 = vld [vmem:[%s291 + $0x50] sm:$0xff]
        %v402 = vld [vmem:[%s291 + $0x58] sm:$0xff]
        %v403 = vld [vmem:[%s291 + $0x60] sm:$0xff]
        %v404 = vld [vmem:[%s291 + $0x68] sm:$0xff]
        %v405 = vld [vmem:[%s291 + $0x70] sm:$0xff]
        %v406 = vld [vmem:[%s291 + $0x78] sm:$0xff]
        %v407 = vpack.c.bf16 %v392, %v391
        %v408 = vpack.c.bf16 %v394, %v393
        %v409 = vpack.c.bf16 %v396, %v395
        %v410 = vpack.c.bf16 %v398, %v397
        %v411 = vpack.c.bf16 %v400, %v399
        %v412 = vpack.c.bf16 %v402, %v401
        %v413 = vpack.c.bf16 %v404, %v403
        %v414 = vpack.c.bf16 %v406, %v405
        %416 = vset.pattern.permute.xlu0 0
        %417 = vperm.xlu0 %416, %v341
        %v418 = vpop.permute.xlu0 %417
        %421 = vset.pattern.permute.xlu0 0
        %422 = vperm.xlu0 %421, %v342
        %v423 = vpop.permute.xlu0 %422
        %426 = vset.pattern.permute.xlu0 0
        %427 = vperm.xlu0 %426, %v343
        %v428 = vpop.permute.xlu0 %427
        %431 = vset.pattern.permute.xlu0 0
        %432 = vperm.xlu0 %431, %v344
        %v433 = vpop.permute.xlu0 %432
        %436 = vset.pattern.permute.xlu0 0
        %437 = vperm.xlu0 %436, %v345
        %v438 = vpop.permute.xlu0 %437
        %441 = vset.pattern.permute.xlu0 0
        %442 = vperm.xlu0 %441, %v346
        %v443 = vpop.permute.xlu0 %442
        %446 = vset.pattern.permute.xlu0 0
        %447 = vperm.xlu0 %446, %v347
        %v448 = vpop.permute.xlu0 %447
        %451 = vset.pattern.permute.xlu0 0
        %452 = vperm.xlu0 %451, %v348
        %v453 = vpop.permute.xlu0 %452
        %456 = vset.pattern.permute.xlu0 0
        %457 = vperm.xlu0 %456, %v349
        %v458 = vpop.permute.xlu0 %457
        %461 = vset.pattern.permute.xlu0 0
        %462 = vperm.xlu0 %461, %v350
        %v463 = vpop.permute.xlu0 %462
        %466 = vset.pattern.permute.xlu0 0
        %467 = vperm.xlu0 %466, %v351
        %v468 = vpop.permute.xlu0 %467
        %471 = vset.pattern.permute.xlu0 0
        %472 = vperm.xlu0 %471, %v352
        %v473 = vpop.permute.xlu0 %472
        %476 = vset.pattern.permute.xlu0 0
        %477 = vperm.xlu0 %476, %v353
        %v478 = vpop.permute.xlu0 %477
        %481 = vset.pattern.permute.xlu0 0
        %482 = vperm.xlu0 %481, %v354
        %v483 = vpop.permute.xlu0 %482
        %486 = vset.pattern.permute.xlu0 0
        %487 = vperm.xlu0 %486, %v355
        %v488 = vpop.permute.xlu0 %487
        %491 = vset.pattern.permute.xlu0 0
        %492 = vperm.xlu0 %491, %v356
        %v493 = vpop.permute.xlu0 %492
        %496 = vset.pattern.permute.xlu0 0
        %497 = vperm.xlu0 %496, %v357
        %v498 = vpop.permute.xlu0 %497
        %501 = vset.pattern.permute.xlu0 0
        %502 = vperm.xlu0 %501, %v358
        %v503 = vpop.permute.xlu0 %502
        %506 = vset.pattern.permute.xlu0 0
        %507 = vperm.xlu0 %506, %v359
        %v508 = vpop.permute.xlu0 %507
        %511 = vset.pattern.permute.xlu0 0
        %512 = vperm.xlu0 %511, %v360
        %v513 = vpop.permute.xlu0 %512
        %516 = vset.pattern.permute.xlu0 0
        %517 = vperm.xlu0 %516, %v361
        %v518 = vpop.permute.xlu0 %517
        %521 = vset.pattern.permute.xlu0 0
        %522 = vperm.xlu0 %521, %v362
        %v523 = vpop.permute.xlu0 %522
        %526 = vset.pattern.permute.xlu0 0
        %527 = vperm.xlu0 %526, %v363
        %v528 = vpop.permute.xlu0 %527
        %531 = vset.pattern.permute.xlu0 0
        %532 = vperm.xlu0 %531, %v364
        %v533 = vpop.permute.xlu0 %532
        %536 = vset.pattern.permute.xlu0 0
        %537 = vperm.xlu0 %536, %v365
        %v538 = vpop.permute.xlu0 %537
        %541 = vset.pattern.permute.xlu0 0
        %542 = vperm.xlu0 %541, %v366
        %v543 = vpop.permute.xlu0 %542
        %546 = vset.pattern.permute.xlu0 0
        %547 = vperm.xlu0 %546, %v367
        %v548 = vpop.permute.xlu0 %547
        %551 = vset.pattern.permute.xlu0 0
        %552 = vperm.xlu0 %551, %v368
        %v553 = vpop.permute.xlu0 %552
        %556 = vset.pattern.permute.xlu0 0
        %557 = vperm.xlu0 %556, %v369
        %v558 = vpop.permute.xlu0 %557
        %561 = vset.pattern.permute.xlu0 0
        %562 = vperm.xlu0 %561, %v370
        %v563 = vpop.permute.xlu0 %562
        %566 = vset.pattern.permute.xlu0 0
        %567 = vperm.xlu0 %566, %v371
        %v568 = vpop.permute.xlu0 %567
        %571 = vset.pattern.permute.xlu0 0
        %572 = vperm.xlu0 %571, %v372
        %v573 = vpop.permute.xlu0 %572
        %v607 = vunpack.c.l.b16 %v293
        %v608 = vunpack.c.l.b16 %v294
        %v609 = vunpack.c.l.b16 %v295
        %v610 = vunpack.c.l.b16 %v296
        %v611 = vunpack.c.l.b16 %v297
        %v612 = vunpack.c.l.b16 %v298
        %v613 = vunpack.c.l.b16 %v299
        %v614 = vunpack.c.l.b16 %v300
        %v615 = vunpack.c.l.b16 %v301
        %v616 = vunpack.c.l.b16 %v302
        %v617 = vunpack.c.l.b16 %v303
        %v618 = vunpack.c.l.b16 %v304
        %v619 = vunpack.c.l.b16 %v305
        %v620 = vunpack.c.l.b16 %v306
        %v621 = vunpack.c.l.b16 %v307
        %v622 = vunpack.c.l.b16 %v308
        %v623 = vunpack.c.l.b16 %v309
        %v624 = vunpack.c.l.b16 %v310
        %v625 = vunpack.c.l.b16 %v311
        %v626 = vunpack.c.l.b16 %v312
        %v627 = vunpack.c.l.b16 %v313
        %v628 = vunpack.c.l.b16 %v314
        %v629 = vunpack.c.l.b16 %v315
        %v630 = vunpack.c.l.b16 %v316
        %v631 = vunpack.c.l.b16 %v317
        %v632 = vunpack.c.l.b16 %v318
        %v633 = vunpack.c.l.b16 %v319
        %v634 = vunpack.c.l.b16 %v320
        %v635 = vunpack.c.l.b16 %v321
        %v636 = vunpack.c.l.b16 %v322
        %v637 = vunpack.c.l.b16 %v323
        %v638 = vunpack.c.l.b16 %v324
        %v639 = vpack.c.b16 %v608, %v607
        %v640 = vpack.c.b16 %v610, %v609
        %v641 = vpack.c.b16 %v612, %v611
        %v642 = vpack.c.b16 %v614, %v613
        %v643 = vpack.c.b16 %v616, %v615
        %v644 = vpack.c.b16 %v618, %v617
        %v645 = vpack.c.b16 %v620, %v619
        %v646 = vpack.c.b16 %v622, %v621
        %v647 = vpack.c.b16 %v624, %v623
        %v648 = vpack.c.b16 %v626, %v625
        %v649 = vpack.c.b16 %v628, %v627
        %v650 = vpack.c.b16 %v630, %v629
        %v651 = vpack.c.b16 %v632, %v631
        %v652 = vpack.c.b16 %v634, %v633
        %v653 = vpack.c.b16 %v636, %v635
        %v654 = vpack.c.b16 %v638, %v637
        %671 = vmatprep.subr.bf16.mxu0 0
        %672 = vmatpush1.bf16.msra.mxu0 %v407
        %673 = vmatprep.subr.bf16.mxu0 0
        %674 = vmatpush1.bf16.msra.mxu0 %v408
        %675 = vmatprep.subr.bf16.mxu0 0
        %676 = vmatpush1.bf16.msra.mxu0 %v409
        %677 = vmatprep.subr.bf16.mxu0 0
        %678 = vmatpush1.bf16.msra.mxu0 %v410
        %679 = vmatprep.subr.bf16.mxu0 0
        %680 = vmatpush1.bf16.msra.mxu0 %v411
        %681 = vmatprep.subr.bf16.mxu0 0
        %682 = vmatpush1.bf16.msra.mxu0 %v412
        %683 = vmatprep.subr.bf16.mxu0 0
        %684 = vmatpush1.bf16.msra.mxu0 %v413
        %685 = vmatprep.subr.bf16.mxu0 0
        %686 = vmatpush1.bf16.msra.mxu0 %v414
        %687 = vmatprep.subr.bf16.mxu0 0
        %688 = vmatpush1.bf16.msra.mxu0 0
        %689 = vmatprep.subr.bf16.mxu0 0
        %690 = vmatpush1.bf16.msra.mxu0 0
        %691 = vmatprep.subr.bf16.mxu0 0
        %692 = vmatpush1.bf16.msra.mxu0 0
        %693 = vmatprep.subr.bf16.mxu0 0
        %694 = vmatpush1.bf16.msra.mxu0 0
        %695 = vmatprep.subr.bf16.mxu0 0
        %696 = vmatpush1.bf16.msra.mxu0 0
        %697 = vmatprep.subr.bf16.mxu0 0
        %698 = vmatpush1.bf16.msra.mxu0 0
        %699 = vmatprep.subr.bf16.mxu0 0
        %700 = vmatpush1.bf16.msra.mxu0 0
        %701 = vmatprep.subr.bf16.mxu0 0
        %702 = vmatpush1.bf16.msra.mxu0 0
        %703 = vmatprep.mubr.bf16.mxu0 0
        %704 = vmatmul.mubr.bf16.gmra.mrb[0].mxu0 %v639
        %v705 = vpop.f32.mrb[0].mxu0
        %v706 = vadd.f32 %v418, %v705
        %v707 = vpop.f32.mrb[0].mxu0
        %v708 = vpop.f32.mrb[0].mxu0
        %v709 = vadd.f32 %v423, %v708
        %v710 = vpop.f32.mrb[0].mxu0
        %711 = vmatprep.mubr.bf16.mxu0 0
        %712 = vmatmul.mubr.bf16.gmra.mrb[0].mxu0 %v640
        %v713 = vpop.f32.mrb[0].mxu0
        %v714 = vadd.f32 %v428, %v713
        %v715 = vpop.f32.mrb[0].mxu0
        %v716 = vpop.f32.mrb[0].mxu0
        %v717 = vadd.f32 %v433, %v716
        %v718 = vpop.f32.mrb[0].mxu0
        %719 = vmatprep.mubr.bf16.mxu0 0
        %720 = vmatmul.mubr.bf16.gmra.mrb[0].mxu0 %v641
        %v721 = vpop.f32.mrb[0].mxu0
        %v722 = vadd.f32 %v438, %v721
        %v723 = vpop.f32.mrb[0].mxu0
        %v724 = vpop.f32.mrb[0].mxu0
        %v725 = vadd.f32 %v443, %v724
        %v726 = vpop.f32.mrb[0].mxu0
        %727 = vmatprep.mubr.bf16.mxu0 0
        %728 = vmatmul.mubr.bf16.gmra.mrb[0].mxu0 %v642
        %v729 = vpop.f32.mrb[0].mxu0
        %v730 = vadd.f32 %v448, %v729
        %v731 = vpop.f32.mrb[0].mxu0
        %v732 = vpop.f32.mrb[0].mxu0
        %v733 = vadd.f32 %v453, %v732
        %v734 = vpop.f32.mrb[0].mxu0
        %735 = vmatprep.mubr.bf16.mxu0 0
        %736 = vmatmul.mubr.bf16.gmra.mrb[0].mxu0 %v643
        %v737 = vpop.f32.mrb[0].mxu0
        %v738 = vadd.f32 %v458, %v737
        %v739 = vpop.f32.mrb[0].mxu0
        %v740 = vpop.f32.mrb[0].mxu0
        %v741 = vadd.f32 %v463, %v740
        %v742 = vpop.f32.mrb[0].mxu0
        %743 = vmatprep.mubr.bf16.mxu0 0
        %744 = vmatmul.mubr.bf16.gmra.mrb[0].mxu0 %v644
        %v745 = vpop.f32.mrb[0].mxu0
        %v746 = vadd.f32 %v468, %v745
        %v747 = vpop.f32.mrb[0].mxu0
        %v748 = vpop.f32.mrb[0].mxu0
        %v749 = vadd.f32 %v473, %v748
        %v750 = vpop.f32.mrb[0].mxu0
        %751 = vmatprep.mubr.bf16.mxu0 0
        %752 = vmatmul.mubr.bf16.gmra.mrb[0].mxu0 %v645
        %v753 = vpop.f32.mrb[0].mxu0
        %v754 = vadd.f32 %v478, %v753
        %v755 = vpop.f32.mrb[0].mxu0
        %v756 = vpop.f32.mrb[0].mxu0
        %v757 = vadd.f32 %v483, %v756
        %v758 = vpop.f32.mrb[0].mxu0
        %759 = vmatprep.mubr.bf16.mxu0 0
        %760 = vmatmul.mubr.bf16.gmra.mrb[0].mxu0 %v646
        %v761 = vpop.f32.mrb[0].mxu0
        %v762 = vadd.f32 %v488, %v761
        %v763 = vpop.f32.mrb[0].mxu0
        %v764 = vpop.f32.mrb[0].mxu0
        %v765 = vadd.f32 %v493, %v764
        %v766 = vpop.f32.mrb[0].mxu0
        %767 = vmatprep.mubr.bf16.mxu0 0
        %768 = vmatmul.mubr.bf16.gmra.mrb[0].mxu0 %v647
        %v769 = vpop.f32.mrb[0].mxu0
        %v770 = vadd.f32 %v498, %v769
        %v771 = vpop.f32.mrb[0].mxu0
        %v772 = vpop.f32.mrb[0].mxu0
        %v773 = vadd.f32 %v503, %v772
        %v774 = vpop.f32.mrb[0].mxu0
        %775 = vmatprep.mubr.bf16.mxu0 0
        %776 = vmatmul.mubr.bf16.gmra.mrb[0].mxu0 %v648
        %v777 = vpop.f32.mrb[0].mxu0
        %v778 = vadd.f32 %v508, %v777
        %v779 = vpop.f32.mrb[0].mxu0
        %v780 = vpop.f32.mrb[0].mxu0
        %v781 = vadd.f32 %v513, %v780
        %v782 = vpop.f32.mrb[0].mxu0
        %783 = vmatprep.mubr.bf16.mxu0 0
        %784 = vmatmul.mubr.bf16.gmra.mrb[0].mxu0 %v649
        %v785 = vpop.f32.mrb[0].mxu0
        %v786 = vadd.f32 %v518, %v785
        %v787 = vpop.f32.mrb[0].mxu0
        %v788 = vpop.f32.mrb[0].mxu0
        %v789 = vadd.f32 %v523, %v788
        %v790 = vpop.f32.mrb[0].mxu0
        %791 = vmatprep.mubr.bf16.mxu0 0
        %792 = vmatmul.mubr.bf16.gmra.mrb[0].mxu0 %v650
        %v793 = vpop.f32.mrb[0].mxu0
        %v794 = vadd.f32 %v528, %v793
        %v795 = vpop.f32.mrb[0].mxu0
        %v796 = vpop.f32.mrb[0].mxu0
        %v797 = vadd.f32 %v533, %v796
        %v798 = vpop.f32.mrb[0].mxu0
        %799 = vmatprep.mubr.bf16.mxu0 0
        %800 = vmatmul.mubr.bf16.gmra.mrb[0].mxu0 %v651
        %v801 = vpop.f32.mrb[0].mxu0
        %v802 = vadd.f32 %v538, %v801
        %v803 = vpop.f32.mrb[0].mxu0
        %v804 = vpop.f32.mrb[0].mxu0
        %v805 = vadd.f32 %v543, %v804
        %v806 = vpop.f32.mrb[0].mxu0
        %807 = vmatprep.mubr.bf16.mxu0 0
        %808 = vmatmul.mubr.bf16.gmra.mrb[0].mxu0 %v652
        %v809 = vpop.f32.mrb[0].mxu0
        %v810 = vadd.f32 %v548, %v809
        %v811 = vpop.f32.mrb[0].mxu0
        %v812 = vpop.f32.mrb[0].mxu0
        %v813 = vadd.f32 %v553, %v812
        %v814 = vpop.f32.mrb[0].mxu0
        %815 = vmatprep.mubr.bf16.mxu0 0
        %816 = vmatmul.mubr.bf16.gmra.mrb[0].mxu0 %v653
        %v817 = vpop.f32.mrb[0].mxu0
        %v818 = vadd.f32 %v558, %v817
        %v819 = vpop.f32.mrb[0].mxu0
        %v820 = vpop.f32.mrb[0].mxu0
        %v821 = vadd.f32 %v563, %v820
        %v822 = vpop.f32.mrb[0].mxu0
        %823 = vmatprep.mubr.bf16.mxu0 0
        %824 = vmatmul.mubr.bf16.gmra.mrb[0].mxu0 %v654
        %v825 = vpop.f32.mrb[0].mxu0
        %v826 = vadd.f32 %v568, %v825
        %v827 = vpop.f32.mrb[0].mxu0
        %v828 = vpop.f32.mrb[0].mxu0
        %v829 = vadd.f32 %v573, %v828
        %v830 = vpop.f32.mrb[0].mxu0
        %831 = vdwg.mxu0
        %v832 = vmax.f32 %v706, 0.0
        %v833 = vmax.f32 %v709, 0.0
        %v834 = vmax.f32 %v714, 0.0
        %v835 = vmax.f32 %v717, 0.0
        %v836 = vmax.f32 %v722, 0.0
        %v837 = vmax.f32 %v725, 0.0
        %v838 = vmax.f32 %v730, 0.0
        %v839 = vmax.f32 %v733, 0.0
        %v840 = vmax.f32 %v738, 0.0
        %v841 = vmax.f32 %v741, 0.0
        %v842 = vmax.f32 %v746, 0.0
        %v843 = vmax.f32 %v749, 0.0
        %v844 = vmax.f32 %v754, 0.0
        %v845 = vmax.f32 %v757, 0.0
        %v846 = vmax.f32 %v762, 0.0
        %v847 = vmax.f32 %v765, 0.0
        %v848 = vmax.f32 %v770, 0.0
        %v849 = vmax.f32 %v773, 0.0
        %v850 = vmax.f32 %v778, 0.0
        %v851 = vmax.f32 %v781, 0.0
        %v852 = vmax.f32 %v786, 0.0
        %v853 = vmax.f32 %v789, 0.0
        %v854 = vmax.f32 %v794, 0.0
        %v855 = vmax.f32 %v797, 0.0
        %v856 = vmax.f32 %v802, 0.0
        %v857 = vmax.f32 %v805, 0.0
        %v858 = vmax.f32 %v810, 0.0
        %v859 = vmax.f32 %v813, 0.0
        %v860 = vmax.f32 %v818, 0.0
        %v861 = vmax.f32 %v821, 0.0
        %v862 = vmax.f32 %v826, 0.0
        %v863 = vmax.f32 %v829, 0.0
        %v864 = vpack.c.bf16 %v833, %v832
        %v865 = vpack.c.bf16 %v835, %v834
        %v866 = vpack.c.bf16 %v837, %v836
        %v867 = vpack.c.bf16 %v839, %v838
        %v868 = vpack.c.bf16 %v841, %v840
        %v869 = vpack.c.bf16 %v843, %v842
        %v870 = vpack.c.bf16 %v845, %v844
        %v871 = vpack.c.bf16 %v847, %v846
        %v872 = vpack.c.bf16 %v849, %v848
        %v873 = vpack.c.bf16 %v851, %v850
        %v874 = vpack.c.bf16 %v853, %v852
        %v875 = vpack.c.bf16 %v855, %v854
        %v876 = vpack.c.bf16 %v857, %v856
        %v877 = vpack.c.bf16 %v859, %v858
        %v878 = vpack.c.bf16 %v861, %v860
        %v879 = vpack.c.bf16 %v863, %v862
        %881 = vset.pattern.permute.xlu0 0
        %882 = vperm.xlu0 %881, %v373
        %v883 = vpop.permute.xlu0 %882
        %886 = vset.pattern.permute.xlu0 0
        %887 = vperm.xlu0 %886, %v374
        %v888 = vpop.permute.xlu0 %887
        %891 = vset.pattern.permute.xlu0 0
        %892 = vperm.xlu0 %891, %v375
        %v893 = vpop.permute.xlu0 %892
        %896 = vset.pattern.permute.xlu0 0
        %897 = vperm.xlu0 %896, %v376
        %v898 = vpop.permute.xlu0 %897
        %901 = vset.pattern.permute.xlu0 0
        %902 = vperm.xlu0 %901, %v377
        %v903 = vpop.permute.xlu0 %902
        %906 = vset.pattern.permute.xlu0 0
        %907 = vperm.xlu0 %906, %v378
        %v908 = vpop.permute.xlu0 %907
        %911 = vset.pattern.permute.xlu0 0
        %912 = vperm.xlu0 %911, %v379
        %v913 = vpop.permute.xlu0 %912
        %916 = vset.pattern.permute.xlu0 0
        %917 = vperm.xlu0 %916, %v380
        %v918 = vpop.permute.xlu0 %917
        %921 = vset.pattern.permute.xlu0 0
        %922 = vperm.xlu0 %921, %v381
        %v923 = vpop.permute.xlu0 %922
        %926 = vset.pattern.permute.xlu0 0
        %927 = vperm.xlu0 %926, %v382
        %v928 = vpop.permute.xlu0 %927
        %931 = vset.pattern.permute.xlu0 0
        %932 = vperm.xlu0 %931, %v383
        %v933 = vpop.permute.xlu0 %932
        %936 = vset.pattern.permute.xlu0 0
        %937 = vperm.xlu0 %936, %v384
        %v938 = vpop.permute.xlu0 %937
        %941 = vset.pattern.permute.xlu0 0
        %942 = vperm.xlu0 %941, %v385
        %v943 = vpop.permute.xlu0 %942
        %946 = vset.pattern.permute.xlu0 0
        %947 = vperm.xlu0 %946, %v386
        %v948 = vpop.permute.xlu0 %947
        %951 = vset.pattern.permute.xlu0 0
        %952 = vperm.xlu0 %951, %v387
        %v953 = vpop.permute.xlu0 %952
        %956 = vset.pattern.permute.xlu0 0
        %957 = vperm.xlu0 %956, %v388
        %v958 = vpop.permute.xlu0 %957
        %v976 = vunpack.c.l.b16 %v325
        %v977 = vunpack.c.h.b16 %v325
        %v978 = vunpack.c.l.b16 %v326
        %v979 = vunpack.c.h.b16 %v326
        %v980 = vunpack.c.l.b16 %v327
        %v981 = vunpack.c.h.b16 %v327
        %v982 = vunpack.c.l.b16 %v328
        %v983 = vunpack.c.h.b16 %v328
        %v984 = vunpack.c.l.b16 %v329
        %v985 = vunpack.c.h.b16 %v329
        %v986 = vunpack.c.l.b16 %v330
        %v987 = vunpack.c.h.b16 %v330
        %v988 = vunpack.c.l.b16 %v331
        %v989 = vunpack.c.h.b16 %v331
        %v990 = vunpack.c.l.b16 %v332
        %v991 = vunpack.c.h.b16 %v332
        %v992 = vunpack.c.l.b16 %v333
        %v993 = vunpack.c.h.b16 %v333
        %v994 = vunpack.c.l.b16 %v334
        %v995 = vunpack.c.h.b16 %v334
        %v996 = vunpack.c.l.b16 %v335
        %v997 = vunpack.c.h.b16 %v335
        %v998 = vunpack.c.l.b16 %v336
        %v999 = vunpack.c.h.b16 %v336
        %v1000 = vunpack.c.l.b16 %v337
        %v1001 = vunpack.c.h.b16 %v337
        %v1002 = vunpack.c.l.b16 %v338
        %v1003 = vunpack.c.h.b16 %v338
        %v1004 = vunpack.c.l.b16 %v339
        %v1005 = vunpack.c.h.b16 %v339
        %v1006 = vunpack.c.l.b16 %v340
        %v1007 = vunpack.c.h.b16 %v340
        %v1008 = vpack.c.b16 %v978, %v976
        %v1009 = vpack.c.b16 %v979, %v977
        %v1010 = vpack.c.b16 %v982, %v980
        %v1011 = vpack.c.b16 %v983, %v981
        %v1012 = vpack.c.b16 %v986, %v984
        %v1013 = vpack.c.b16 %v987, %v985
        %v1014 = vpack.c.b16 %v990, %v988
        %v1015 = vpack.c.b16 %v991, %v989
        %v1016 = vpack.c.b16 %v994, %v992
        %v1017 = vpack.c.b16 %v995, %v993
        %v1018 = vpack.c.b16 %v998, %v996
        %v1019 = vpack.c.b16 %v999, %v997
        %v1020 = vpack.c.b16 %v1002, %v1000
        %v1021 = vpack.c.b16 %v1003, %v1001
        %v1022 = vpack.c.b16 %v1006, %v1004
        %v1023 = vpack.c.b16 %v1007, %v1005
        %1040 = vmatprep.subr.bf16.mxu0 0
        %1041 = vmatpush1.bf16.msra.mxu0 %v864
        %1042 = vmatprep.subr.bf16.mxu0 0
        %1043 = vmatpush1.bf16.msra.mxu0 %v865
        %1044 = vmatprep.subr.bf16.mxu0 0
        %1045 = vmatpush1.bf16.msra.mxu0 %v866
        %1046 = vmatprep.subr.bf16.mxu0 0
        %1047 = vmatpush1.bf16.msra.mxu0 %v867
        %1048 = vmatprep.subr.bf16.mxu0 0
        %1049 = vmatpush1.bf16.msra.mxu0 %v868
        %1050 = vmatprep.subr.bf16.mxu0 0
        %1051 = vmatpush1.bf16.msra.mxu0 %v869
        %1052 = vmatprep.subr.bf16.mxu0 0
        %1053 = vmatpush1.bf16.msra.mxu0 %v870
        %1054 = vmatprep.subr.bf16.mxu0 0
        %1055 = vmatpush1.bf16.msra.mxu0 %v871
        %1056 = vmatprep.subr.bf16.mxu0 0
        %1057 = vmatpush1.bf16.msra.mxu0 %v872
        %1058 = vmatprep.subr.bf16.mxu0 0
        %1059 = vmatpush1.bf16.msra.mxu0 %v873
        %1060 = vmatprep.subr.bf16.mxu0 0
        %1061 = vmatpush1.bf16.msra.mxu0 %v874
        %1062 = vmatprep.subr.bf16.mxu0 0
        %1063 = vmatpush1.bf16.msra.mxu0 %v875
        %1064 = vmatprep.subr.bf16.mxu0 0
        %1065 = vmatpush1.bf16.msra.mxu0 %v876
        %1066 = vmatprep.subr.bf16.mxu0 0
        %1067 = vmatpush1.bf16.msra.mxu0 %v877
        %1068 = vmatprep.subr.bf16.mxu0 0
        %1069 = vmatpush1.bf16.msra.mxu0 %v878
        %1070 = vmatprep.subr.bf16.mxu0 0
        %1071 = vmatpush1.bf16.msra.mxu0 %v879
        %1072 = vmatprep.mubr.bf16.mxu0 %v1009
        %1073 = vmatmul.mubr.bf16.gmra.mrb[0].mxu0 %v1008
        %v1074 = vpop.f32.mrb[0].mxu0
        %v1075 = vadd.f32 %v883, %v1074
        %v1076 = vpop.f32.mrb[0].mxu0
        %v1077 = vpop.f32.mrb[0].mxu0
        %v1078 = vadd.f32 %v888, %v1077
        %v1079 = vpop.f32.mrb[0].mxu0
        %1080 = vmatprep.mubr.bf16.mxu0 %v1011
        %1081 = vmatmul.mubr.bf16.gmra.mrb[0].mxu0 %v1010
        %v1082 = vpop.f32.mrb[0].mxu0
        %v1083 = vadd.f32 %v893, %v1082
        %v1084 = vpop.f32.mrb[0].mxu0
        %v1085 = vpop.f32.mrb[0].mxu0
        %v1086 = vadd.f32 %v898, %v1085
        %v1087 = vpop.f32.mrb[0].mxu0
        %1088 = vmatprep.mubr.bf16.mxu0 %v1013
        %1089 = vmatmul.mubr.bf16.gmra.mrb[0].mxu0 %v1012
        %v1090 = vpop.f32.mrb[0].mxu0
        %v1091 = vadd.f32 %v903, %v1090
        %v1092 = vpop.f32.mrb[0].mxu0
        %v1093 = vpop.f32.mrb[0].mxu0
        %v1094 = vadd.f32 %v908, %v1093
        %v1095 = vpop.f32.mrb[0].mxu0
        %1096 = vmatprep.mubr.bf16.mxu0 %v1015
        %1097 = vmatmul.mubr.bf16.gmra.mrb[0].mxu0 %v1014
        %v1098 = vpop.f32.mrb[0].mxu0
        %v1099 = vadd.f32 %v913, %v1098
        %v1100 = vpop.f32.mrb[0].mxu0
        %v1101 = vpop.f32.mrb[0].mxu0
        %v1102 = vadd.f32 %v918, %v1101
        %v1103 = vpop.f32.mrb[0].mxu0
        %1104 = vmatprep.mubr.bf16.mxu0 %v1017
        %1105 = vmatmul.mubr.bf16.gmra.mrb[0].mxu0 %v1016
        %v1106 = vpop.f32.mrb[0].mxu0
        %v1107 = vadd.f32 %v923, %v1106
        %v1108 = vpop.f32.mrb[0].mxu0
        %v1109 = vpop.f32.mrb[0].mxu0
        %v1110 = vadd.f32 %v928, %v1109
        %v1111 = vpop.f32.mrb[0].mxu0
        %1112 = vmatprep.mubr.bf16.mxu0 %v1019
        %1113 = vmatmul.mubr.bf16.gmra.mrb[0].mxu0 %v1018
        %v1114 = vpop.f32.mrb[0].mxu0
        %v1115 = vadd.f32 %v933, %v1114
        %v1116 = vpop.f32.mrb[0].mxu0
        %v1117 = vpop.f32.mrb[0].mxu0
        %v1118 = vadd.f32 %v938, %v1117
        %v1119 = vpop.f32.mrb[0].mxu0
        %1120 = vmatprep.mubr.bf16.mxu0 %v1021
        %1121 = vmatmul.mubr.bf16.gmra.mrb[0].mxu0 %v1020
        %v1122 = vpop.f32.mrb[0].mxu0
        %v1123 = vadd.f32 %v943, %v1122
        %v1124 = vpop.f32.mrb[0].mxu0
        %v1125 = vpop.f32.mrb[0].mxu0
        %v1126 = vadd.f32 %v948, %v1125
        %v1127 = vpop.f32.mrb[0].mxu0
        %1128 = vmatprep.mubr.bf16.mxu0 %v1023
        %1129 = vmatmul.mubr.bf16.gmra.mrb[0].mxu0 %v1022
        %v1130 = vpop.f32.mrb[0].mxu0
        %v1131 = vadd.f32 %v953, %v1130
        %v1132 = vpop.f32.mrb[0].mxu0
        %v1133 = vpop.f32.mrb[0].mxu0
        %v1134 = vadd.f32 %v958, %v1133
        %v1135 = vpop.f32.mrb[0].mxu0
        %1136 = vdwg.mxu0
        %v1137 = vadd.f32 %v391, %v1075
        %v1138 = vadd.f32 %v392, %v1078
        %v1139 = vadd.f32 %v393, %v1083
        %v1140 = vadd.f32 %v394, %v1086
        %v1141 = vadd.f32 %v395, %v1091
        %v1142 = vadd.f32 %v396, %v1094
        %v1143 = vadd.f32 %v397, %v1099
        %v1144 = vadd.f32 %v398, %v1102
        %v1145 = vadd.f32 %v399, %v1107
        %v1146 = vadd.f32 %v400, %v1110
        %v1147 = vadd.f32 %v401, %v1115
        %v1148 = vadd.f32 %v402, %v1118
        %v1149 = vadd.f32 %v403, %v1123
        %v1150 = vadd.f32 %v404, %v1126
        %v1151 = vadd.f32 %v405, %v1131
        %v1152 = vadd.f32 %v406, %v1134
        %1153 = vadd.xlane.f32.xlu0 %v1137
        %v1154 = vpop.xlane.xlu0 %1153
        %1155 = vadd.xlane.f32.xlu0 %v1138
        %v1156 = vpop.xlane.xlu0 %1155
        %1157 = vadd.xlane.f32.xlu0 %v1139
        %v1158 = vpop.xlane.xlu0 %1157
        %1159 = vadd.xlane.f32.xlu0 %v1140
        %v1160 = vpop.xlane.xlu0 %1159
        %1161 = vadd.xlane.f32.xlu0 %v1141
        %v1162 = vpop.xlane.xlu0 %1161
        %1163 = vadd.xlane.f32.xlu0 %v1142
        %v1164 = vpop.xlane.xlu0 %1163
        %1165 = vadd.xlane.f32.xlu0 %v1143
        %v1166 = vpop.xlane.xlu0 %1165
        %1167 = vadd.xlane.f32.xlu0 %v1144
        %v1168 = vpop.xlane.xlu0 %1167
        %1169 = vadd.xlane.f32.xlu0 %v1145
        %v1170 = vpop.xlane.xlu0 %1169
        %1171 = vadd.xlane.f32.xlu0 %v1146
        %v1172 = vpop.xlane.xlu0 %1171
        %1173 = vadd.xlane.f32.xlu0 %v1147
        %v1174 = vpop.xlane.xlu0 %1173
        %1175 = vadd.xlane.f32.xlu0 %v1148
        %v1176 = vpop.xlane.xlu0 %1175
        %1177 = vadd.xlane.f32.xlu0 %v1149
        %v1178 = vpop.xlane.xlu0 %1177
        %1179 = vadd.xlane.f32.xlu0 %v1150
        %v1180 = vpop.xlane.xlu0 %1179
        %1181 = vadd.xlane.f32.xlu0 %v1151
        %v1182 = vpop.xlane.xlu0 %1181
        %1183 = vadd.xlane.f32.xlu0 %v1152
        %v1184 = vpop.xlane.xlu0 %1183
        %v1185 = vrcp.pop 128.0
        %v1186 = vmul.f32 %v1154, %v1185
        %v1187 = vmul.f32 %v1156, %v1185
        %v1188 = vmul.f32 %v1158, %v1185
        %v1189 = vmul.f32 %v1160, %v1185
        %v1190 = vmul.f32 %v1162, %v1185
        %v1191 = vmul.f32 %v1164, %v1185
        %v1192 = vmul.f32 %v1166, %v1185
        %v1193 = vmul.f32 %v1168, %v1185
        %v1194 = vmul.f32 %v1170, %v1185
        %v1195 = vmul.f32 %v1172, %v1185
        %v1196 = vmul.f32 %v1174, %v1185
        %v1197 = vmul.f32 %v1176, %v1185
        %v1198 = vmul.f32 %v1178, %v1185
        %v1199 = vmul.f32 %v1180, %v1185
        %v1200 = vmul.f32 %v1182, %v1185
        %v1201 = vmul.f32 %v1184, %v1185
        %v1202 = vsub.f32 %v1137, %v1186
        %v1203 = vsub.f32 %v1138, %v1187
        %v1204 = vsub.f32 %v1139, %v1188
        %v1205 = vsub.f32 %v1140, %v1189
        %v1206 = vsub.f32 %v1141, %v1190
        %v1207 = vsub.f32 %v1142, %v1191
        %v1208 = vsub.f32 %v1143, %v1192
        %v1209 = vsub.f32 %v1144, %v1193
        %v1210 = vsub.f32 %v1145, %v1194
        %v1211 = vsub.f32 %v1146, %v1195
        %v1212 = vsub.f32 %v1147, %v1196
        %v1213 = vsub.f32 %v1148, %v1197
        %v1214 = vsub.f32 %v1149, %v1198
        %v1215 = vsub.f32 %v1150, %v1199
        %v1216 = vsub.f32 %v1151, %v1200
        %v1217 = vsub.f32 %v1152, %v1201
        %v1218 = vmul.f32 %v1202, %v1202
        %v1219 = vmul.f32 %v1203, %v1203
        %v1220 = vmul.f32 %v1204, %v1204
        %v1221 = vmul.f32 %v1205, %v1205
        %v1222 = vmul.f32 %v1206, %v1206
        %v1223 = vmul.f32 %v1207, %v1207
        %v1224 = vmul.f32 %v1208, %v1208
        %v1225 = vmul.f32 %v1209, %v1209
        %v1226 = vmul.f32 %v1210, %v1210
        %v1227 = vmul.f32 %v1211, %v1211
        %v1228 = vmul.f32 %v1212, %v1212
        %v1229 = vmul.f32 %v1213, %v1213
        %v1230 = vmul.f32 %v1214, %v1214
        %v1231 = vmul.f32 %v1215, %v1215
        %v1232 = vmul.f32 %v1216, %v1216
        %v1233 = vmul.f32 %v1217, %v1217
        %1234 = vadd.xlane.f32.xlu0 %v1218
        %v1235 = vpop.xlane.xlu0 %1234
        %1236 = vadd.xlane.f32.xlu0 %v1219
        %v1237 = vpop.xlane.xlu0 %1236
        %1238 = vadd.xlane.f32.xlu0 %v1220
        %v1239 = vpop.xlane.xlu0 %1238
        %1240 = vadd.xlane.f32.xlu0 %v1221
        %v1241 = vpop.xlane.xlu0 %1240
        %1242 = vadd.xlane.f32.xlu0 %v1222
        %v1243 = vpop.xlane.xlu0 %1242
        %1244 = vadd.xlane.f32.xlu0 %v1223
        %v1245 = vpop.xlane.xlu0 %1244
        %1246 = vadd.xlane.f32.xlu0 %v1224
        %v1247 = vpop.xlane.xlu0 %1246
        %1248 = vadd.xlane.f32.xlu0 %v1225
        %v1249 = vpop.xlane.xlu0 %1248
        %1250 = vadd.xlane.f32.xlu0 %v1226
        %v1251 = vpop.xlane.xlu0 %1250
        %1252 = vadd.xlane.f32.xlu0 %v1227
        %v1253 = vpop.xlane.xlu0 %1252
        %1254 = vadd.xlane.f32.xlu0 %v1228
        %v1255 = vpop.xlane.xlu0 %1254
        %1256 = vadd.xlane.f32.xlu0 %v1229
        %v1257 = vpop.xlane.xlu0 %1256
        %1258 = vadd.xlane.f32.xlu0 %v1230
        %v1259 = vpop.xlane.xlu0 %1258
        %1260 = vadd.xlane.f32.xlu0 %v1231
        %v1261 = vpop.xlane.xlu0 %1260
        %1262 = vadd.xlane.f32.xlu0 %v1232
        %v1263 = vpop.xlane.xlu0 %1262
        %1264 = vadd.xlane.f32.xlu0 %v1233
        %v1265 = vpop.xlane.xlu0 %1264
        %v1266 = vmul.f32 %v1235, %v1185
        %v1267 = vmul.f32 %v1237, %v1185
        %v1268 = vmul.f32 %v1239, %v1185
        %v1269 = vmul.f32 %v1241, %v1185
        %v1270 = vmul.f32 %v1243, %v1185
        %v1271 = vmul.f32 %v1245, %v1185
        %v1272 = vmul.f32 %v1247, %v1185
        %v1273 = vmul.f32 %v1249, %v1185
        %v1274 = vmul.f32 %v1251, %v1185
        %v1275 = vmul.f32 %v1253, %v1185
        %v1276 = vmul.f32 %v1255, %v1185
        %v1277 = vmul.f32 %v1257, %v1185
        %v1278 = vmul.f32 %v1259, %v1185
        %v1279 = vmul.f32 %v1261, %v1185
        %v1280 = vmul.f32 %v1263, %v1185
        %v1281 = vmul.f32 %v1265, %v1185
        %v1282 = vadd.f32 %v1266, 1e-05
        %v1283 = vadd.f32 %v1267, 1e-05
        %v1284 = vadd.f32 %v1268, 1e-05
        %v1285 = vadd.f32 %v1269, 1e-05
        %v1286 = vadd.f32 %v1270, 1e-05
        %v1287 = vadd.f32 %v1271, 1e-05
        %v1288 = vadd.f32 %v1272, 1e-05
        %v1289 = vadd.f32 %v1273, 1e-05
        %v1290 = vadd.f32 %v1274, 1e-05
        %v1291 = vadd.f32 %v1275, 1e-05
        %v1292 = vadd.f32 %v1276, 1e-05
        %v1293 = vadd.f32 %v1277, 1e-05
        %v1294 = vadd.f32 %v1278, 1e-05
        %v1295 = vadd.f32 %v1279, 1e-05
        %v1296 = vadd.f32 %v1280, 1e-05
        %v1297 = vadd.f32 %v1281, 1e-05
        %v1298 = vrsqrt.pop %v1282
        %v1299 = vrsqrt.pop %v1283
        %v1300 = vrsqrt.pop %v1284
        %v1301 = vrsqrt.pop %v1285
        %v1302 = vrsqrt.pop %v1286
        %v1303 = vrsqrt.pop %v1287
        %v1304 = vrsqrt.pop %v1288
        %v1305 = vrsqrt.pop %v1289
        %v1306 = vrsqrt.pop %v1290
        %v1307 = vrsqrt.pop %v1291
        %v1308 = vrsqrt.pop %v1292
        %v1309 = vrsqrt.pop %v1293
        %v1310 = vrsqrt.pop %v1294
        %v1311 = vrsqrt.pop %v1295
        %v1312 = vrsqrt.pop %v1296
        %v1313 = vrsqrt.pop %v1297
        %v1314 = vmul.f32 %v1202, %v1298
        %v1315 = vmul.f32 %v1203, %v1299
        %v1316 = vmul.f32 %v1204, %v1300
        %v1317 = vmul.f32 %v1205, %v1301
        %v1318 = vmul.f32 %v1206, %v1302
        %v1319 = vmul.f32 %v1207, %v1303
        %v1320 = vmul.f32 %v1208, %v1304
        %v1321 = vmul.f32 %v1209, %v1305
        %v1322 = vmul.f32 %v1210, %v1306
        %v1323 = vmul.f32 %v1211, %v1307
        %v1324 = vmul.f32 %v1212, %v1308
        %v1325 = vmul.f32 %v1213, %v1309
        %v1326 = vmul.f32 %v1214, %v1310
        %v1327 = vmul.f32 %v1215, %v1311
        %v1328 = vmul.f32 %v1216, %v1312
        %v1329 = vmul.f32 %v1217, %v1313
        %v1331 = vlaneseq
        %v1332 = vshrl.u32 %v1331, 7
        %v1333 = vsub.s32 0, %v1332
        %v1334 = vrot.slane %v389, %v1333
        %v1336 = vmul.f32 %v1314, %v1334
        %v1337 = vmul.f32 %v1315, %v1334
        %v1338 = vmul.f32 %v1316, %v1334
        %v1339 = vmul.f32 %v1317, %v1334
        %v1340 = vmul.f32 %v1318, %v1334
        %v1341 = vmul.f32 %v1319, %v1334
        %v1342 = vmul.f32 %v1320, %v1334
        %v1343 = vmul.f32 %v1321, %v1334
        %v1344 = vmul.f32 %v1322, %v1334
        %v1345 = vmul.f32 %v1323, %v1334
        %v1346 = vmul.f32 %v1324, %v1334
        %v1347 = vmul.f32 %v1325, %v1334
        %v1348 = vmul.f32 %v1326, %v1334
        %v1349 = vmul.f32 %v1327, %v1334
        %v1350 = vmul.f32 %v1328, %v1334
        %v1351 = vmul.f32 %v1329, %v1334
        %v1353 = vlaneseq
        %v1354 = vshrl.u32 %v1353, 7
        %v1355 = vsub.s32 0, %v1354
        %v1356 = vrot.slane %v390, %v1355
        %v1358 = vadd.f32 %v1336, %v1356
        %v1359 = vadd.f32 %v1337, %v1356
        %v1360 = vadd.f32 %v1338, %v1356
        %v1361 = vadd.f32 %v1339, %v1356
        %v1362 = vadd.f32 %v1340, %v1356
        %v1363 = vadd.f32 %v1341, %v1356
        %v1364 = vadd.f32 %v1342, %v1356
        %v1365 = vadd.f32 %v1343, %v1356
        %v1366 = vadd.f32 %v1344, %v1356
        %v1367 = vadd.f32 %v1345, %v1356
        %v1368 = vadd.f32 %v1346, %v1356
        %v1369 = vadd.f32 %v1347, %v1356
        %v1370 = vadd.f32 %v1348, %v1356
        %v1371 = vadd.f32 %v1349, %v1356
        %v1372 = vadd.f32 %v1350, %v1356
        %v1373 = vadd.f32 %v1351, %v1356
        %1374 = vst [vmem:[%s286] sm:$0xff] %v1358
        %1375 = vst [vmem:[%s286 + $0x8] sm:$0xff] %v1359
        %1376 = vst [vmem:[%s286 + $0x10] sm:$0xff] %v1360
        %1377 = vst [vmem:[%s286 + $0x18] sm:$0xff] %v1361
        %1378 = vst [vmem:[%s286 + $0x20] sm:$0xff] %v1362
        %1379 = vst [vmem:[%s286 + $0x28] sm:$0xff] %v1363
        %1380 = vst [vmem:[%s286 + $0x30] sm:$0xff] %v1364
        %1381 = vst [vmem:[%s286 + $0x38] sm:$0xff] %v1365
        %1382 = vst [vmem:[%s286 + $0x40] sm:$0xff] %v1366
        %1383 = vst [vmem:[%s286 + $0x48] sm:$0xff] %v1367
        %1384 = vst [vmem:[%s286 + $0x50] sm:$0xff] %v1368
        %1385 = vst [vmem:[%s286 + $0x58] sm:$0xff] %v1369
        %1386 = vst [vmem:[%s286 + $0x60] sm:$0xff] %v1370
        %1387 = vst [vmem:[%s286 + $0x68] sm:$0xff] %v1371
        %1388 = vst [vmem:[%s286 + $0x70] sm:$0xff] %v1372
        %1389 = vst [vmem:[%s286 + $0x78] sm:$0xff] %v1373
        %s1390 = sand.u32 %s182, 1
        %s1391 = scalar_lea.sflag [#allocation4], %s1390
        %s1392 = sand.u32 %s182, 1
        %s1393 = smul.addr %s1392, 128
        %s1394 = scalar_lea.vmem [#allocation5], %s1393
        // Predicated region
        $region53: #{tpu_custom_call.1} parent=47 // pred_check
          %p1395 = pneg %p192
        $region54: #{tpu_custom_call.1} parent=47 // pred_check_branch
          %1397 = sbr.rel (%p1395) target = $region56
        $region55: #{tpu_custom_call.1} parent=47 // pred_region
          %s1399 = ssub.s32 2048, 2048
          %1400 = vsyncadd %s1391, %s1399
          %s1401 = smul.addr %s22, 16
          %s1402 = smul.addr %s1401, 128
          %s1403 = scalar_lea.hbm %s7, %s1402
          %s1404 = sshll.u32 %s1394, 4
          %s1405 = int_to_ptr.vmem [resolvable:$true] %s1404
          %1410 = dma.vmem_to_hbm [thread:$0]  %s1405, 2048, %s1403, %s1391, 128, 128, 8
        $region56: #{tpu_custom_call.1} parent=47 // pred_fallthru
          _
      $region48: #{tpu_custom_call.1} parent=5 // pred_fallthru
        _
      %p1411 = scmp.le.s32.totalorder 2, %s17
      // Predicated region
      $region57: #{tpu_custom_call.1} parent=5 // pred_check
        %p1412 = pneg %p1411
      $region58: #{tpu_custom_call.1} parent=5 // pred_check_branch
        %1414 = sbr.rel (%p1412) target = $region60
      $region59: #{tpu_custom_call.1} parent=5 // pred_region
        %s1415 = ssub.s32 %s17, 2
        // Predicated region
        $region61: #{tpu_custom_call.1} parent=59 // pred_check
          %p1416 = pneg %p198
        $region62: #{tpu_custom_call.1} parent=59 // pred_check_branch
          %1418 = sbr.rel (%p1416) target = $region64
        $region63: #{tpu_custom_call.1} parent=59 // pred_region
          %s1419 = sand.u32 %s183, 1
          %s1420 = scalar_lea.sflag [#allocation4], %s1419
          %s1421 = sand.u32 %s183, 1
          %s1422 = smul.addr %s1421, 128
          %s1423 = scalar_lea.vmem [#allocation5], %s1422
          %1424 = dma.done %s1420, 2048
        $region64: #{tpu_custom_call.1} parent=59 // pred_fallthru
          _
      $region60: #{tpu_custom_call.1} parent=5 // pred_fallthru
        _
    $region6: #{tpu_custom_call.1} parent=1 // loop_footer
      %s21 = sadd.s32 1, %s17
    $region7: #{tpu_custom_call.1} parent=1 // loop_footer_branch
      %16 = sbr.rel target = $region3
    $region8: #{tpu_custom_call.1} parent=1 // loop_exit
      _
    %1425 = vsyncpa [#allocation3], 1
    %s1426 = scalar_lea.sflag [#allocation3], 1
    %1427 = vsyncpa %s1426, 1
    %1428 = vsyncpa [#allocation4], 1
    %s1429 = scalar_lea.sflag [#allocation4], 1
    %1430 = vsyncpa %s1429, 1

</llo_original>
